<compile_context>
chip_gen: v7x
topology: tpu7x:2x2x1
jax: 0.10.0
libtpu: 0.0.40
codegen_flags: <defaults>
</compile_context>

<pallas_src>
import jax
import jax.numpy as jnp
from jax import lax
from jax.experimental import pallas as pl
from jax.experimental.pallas import tpu as pltpu


def _round_up(x, m):
    return ((x + m - 1) // m) * m


def _full_spec(shape):
    """BlockSpec for an array kept whole (constant block index) on a 1-D grid."""
    zeros = (0,) * len(shape)
    return pl.BlockSpec(shape, lambda i: zeros)


# ---------------------------------------------------------------------------
# Kernel A: fused encoder pooling + uid hid-mapper + temporal encoder
# ---------------------------------------------------------------------------

def _encoder_kernel(le_ref, mt4_ref, mt3_ref, ts_ref, md3_ref, ue_ref,
                    wtes_ref, wtet_ref, bte_ref,
                    whs_ref, whu_ref, bhid_ref,
                    zs_ref, zt_ref):
    le = le_ref[...].astype(jnp.float32)          # (B, nd, T, D)
    mt4 = mt4_ref[...]                            # (B, nd, T, 1)
    mt3 = mt3_ref[...]                            # (B, nd, T)
    ts = ts_ref[...]                              # (B, nd, T)
    md3 = md3_ref[...]                            # (B, nd, 1)

    # --- SpatialEncoder_H (stand-in): masked mean over steps, then days ----
    cnt_t = jnp.maximum(jnp.sum(mt3, axis=2, keepdims=True), 1.0)   # (B, nd, 1)
    hid_loc = jnp.sum(le * mt4, axis=2) / cnt_t                     # (B, nd, D)
    cnt_d = jnp.maximum(jnp.sum(md3, axis=1), 1.0)                  # (B, 1)
    zs_raw = jnp.sum(hid_loc * md3, axis=1) / cnt_d                 # (B, D)

    # --- TemporalEncoder_H (stand-in): masked time pool fused with zs ------
    tp3 = jnp.sum(ts * mt3, axis=2, keepdims=True) / cnt_t          # (B, nd, 1)
    # (B,nd,1)*(1,nd,Dt) summed over nd == tim_pool @ W_te_t (VPU, no MXU)
    tim_term = jnp.sum(tp3 * wtet_ref[...][None, :, :], axis=1)     # (B, Dt)
    zt_ref[...] = jnp.tanh(
        jnp.dot(zs_raw, wtes_ref[...], preferred_element_type=jnp.float32)
        + tim_term + bte_ref[...])

    # --- uid embedding + hid_mapper (concat realised as split matmuls) -----
    ue = ue_ref[...].astype(jnp.float32)                            # (B, Du)
    zs_ref[...] = (
        jnp.dot(zs_raw, whs_ref[...], preferred_element_type=jnp.float32)
        + jnp.dot(ue, whu_ref[...], preferred_element_type=jnp.float32)
        + bhid_ref[...])


def encoder_fused(loc_emb, tim_src, mask_traj, mask_day, uid_embed, params):
    B, nd, T, D = loc_emb.shape
    Dt = params["W_te"].shape[1]
    Du = uid_embed.shape[1]
    W_te_s, W_te_t = params["W_te"][:D], params["W_te"][D:]
    W_hid_s, W_hid_u = params["W_hid"][:D], params["W_hid"][D:]

    mt3 = mask_traj.astype(jnp.float32)
    mt4 = mt3[..., None]
    md3 = mask_day.astype(jnp.float32)[..., None]
    ts = tim_src.astype(jnp.float32)

    zs, zt = pl.pallas_call(
        _encoder_kernel,
        out_shape=(jax.ShapeDtypeStruct((B, D), jnp.float32),
                   jax.ShapeDtypeStruct((B, Dt), jnp.float32)),
        grid=(1,),
        in_specs=[
            _full_spec((B, nd, T, D)), _full_spec((B, nd, T, 1)),
            _full_spec((B, nd, T)), _full_spec((B, nd, T)),
            _full_spec((B, nd, 1)), _full_spec((B, Du)),
            _full_spec((D, Dt)), _full_spec((nd, Dt)), _full_spec((1, Dt)),
            _full_spec((D, D)), _full_spec((Du, D)), _full_spec((1, D)),
        ],
        out_specs=(_full_spec((B, D)), _full_spec((B, Dt))),
    )(loc_emb, mt4, mt3, ts, md3, uid_embed,
      W_te_s, W_te_t, params["b_te"].reshape(1, Dt),
      W_hid_s, W_hid_u, params["b_hid"].reshape(1, D))
    return zs, zt


# ---------------------------------------------------------------------------
# Kernel B: spatial decoder matmul (+zs broadcast) fused with argmax
# ---------------------------------------------------------------------------

def _decoder_kernel(emb_ref, zs_ref, w_ref, b_ref, logit_ref, idx_ref):
    b = pl.program_id(0)
    x = emb_ref[0].astype(jnp.float32)                      # (L, D)
    zrow = zs_ref[pl.ds(b, 1), :]                           # (1, D) broadcast in-kernel
    h = (x + zrow).astype(jnp.bfloat16)
    logits = (jnp.dot(h, w_ref[...], preferred_element_type=jnp.float32)
              + b_ref[...])                                 # (L, Vp) f32
    logit_ref[0] = logits

    # argmax(log_softmax(x)) == argmax(x); first-occurrence tie-break.
    m = jnp.max(logits, axis=-1, keepdims=True)
    Vp = logits.shape[-1]
    iota = lax.broadcasted_iota(jnp.int32, logits.shape, 1)
    idx = jnp.min(jnp.where(logits >= m, iota, Vp), axis=-1, keepdims=True)
    idx_ref[0] = idx.astype(jnp.int32)


def spatial_decoder_fused(loc_tar_embed, zs, w_dec_pad_bf16, b_dec_pad):
    B, L, D = loc_tar_embed.shape
    Vp = w_dec_pad_bf16.shape[1]
    return pl.pallas_call(
        _decoder_kernel,
        out_shape=(jax.ShapeDtypeStruct((B, L, Vp), jnp.float32),
                   jax.ShapeDtypeStruct((B, L, 1), jnp.int32)),
        grid=(B,),
        in_specs=[
            pl.BlockSpec((1, L, D), lambda b: (b, 0, 0)),
            pl.BlockSpec((B, D), lambda b: (0, 0)),
            pl.BlockSpec((D, Vp), lambda b: (0, 0)),
            pl.BlockSpec((1, Vp), lambda b: (0, 0)),
        ],
        out_specs=(
            pl.BlockSpec((1, L, Vp), lambda b: (b, 0, 0)),
            pl.BlockSpec((1, L, 1), lambda b: (b, 0, 0)),
        ),
        compiler_params=pltpu.CompilerParams(
            dimension_semantics=("parallel",)),
    )(loc_tar_embed, zs, w_dec_pad_bf16, b_dec_pad)


# ---------------------------------------------------------------------------
# Kernel C: LocCompressor MLP + TemporalDecoder fused
# ---------------------------------------------------------------------------

def _tempdec_kernel(ce_ref, zt_ref, wc1_ref, bc1_ref, wc2_ref, bc2_ref,
                    wzp_ref, bzp_ref, wt1_ref, bt1_ref, wt2_ref, bt2_ref,
                    out_ref):
    b = pl.program_id(0)
    x = ce_ref[0].astype(jnp.float32)                                 # (Lc, D)
    h = jnp.maximum(
        jnp.dot(x, wc1_ref[...], preferred_element_type=jnp.float32)
        + bc1_ref[...], 0.0)
    loc_info = (jnp.dot(h, wc2_ref[...], preferred_element_type=jnp.float32)
                + bc2_ref[...])                                       # (Lc, c2)
    ztr = zt_ref[pl.ds(b, 1), :]                                      # (1, Dt)
    zt_proj = (jnp.dot(ztr, wzp_ref[...], preferred_element_type=jnp.float32)
               + bzp_ref[...])                                        # (1, Dh)
    lin1 = (jnp.dot(loc_info, wt1_ref[...], preferred_element_type=jnp.float32)
            + bt1_ref[...])                                           # (Lc, Dh)
    h2 = jnp.maximum(lin1 + zt_proj, 0.0)
    # N=1 head: VPU multiply + lane reduction instead of a 1-column MXU matmul
    tim = jnp.sum(h2 * wt2_ref[...], axis=-1, keepdims=True) + bt2_ref[...]
    out_ref[0] = tim                                                  # (Lc, 1)


def loc_temporal_decoder_fused(comp_emb, zt, params):
    B, Lc, D = comp_emb.shape
    Dt = zt.shape[1]
    c1 = params["W_c1"].shape[1]
    c2 = params["W_c2"].shape[1]
    Dh = params["W_ztp"].shape[1]
    out = pl.pallas_call(
        _tempdec_kernel,
        out_shape=jax.ShapeDtypeStruct((B, Lc, 1), jnp.float32),
        grid=(B,),
        in_specs=[
            pl.BlockSpec((1, Lc, D), lambda b: (b, 0, 0)),
            _full_spec((B, Dt)),
            _full_spec((D, c1)), _full_spec((1, c1)),
            _full_spec((c1, c2)), _full_spec((1, c2)),
            _full_spec((Dt, Dh)), _full_spec((1, Dh)),
            _full_spec((c2, Dh)), _full_spec((1, Dh)),
            _full_spec((1, Dh)), _full_spec((1, 1)),
        ],
        out_specs=pl.BlockSpec((1, Lc, 1), lambda b: (b, 0, 0)),
        compiler_params=pltpu.CompilerParams(
            dimension_semantics=("parallel",)),
    )(comp_emb, zt,
      params["W_c1"], params["b_c1"].reshape(1, c1),
      params["W_c2"], params["b_c2"].reshape(1, c2),
      params["W_ztp"], params["b_ztp"].reshape(1, Dh),
      params["W_td1"], params["b_td1"].reshape(1, Dh),
      params["W_td2"].T, params["b_td2"].reshape(1, 1))
    return out.reshape(B, Lc)


# ---------------------------------------------------------------------------
# STDHMP forward (train mode)
# ---------------------------------------------------------------------------

def stdhmp_forward(params, data_batch, loc_tar):
    """Train-mode forward. Returns (loc_chain_p, tim_chain)."""
    uid_batch, attr_batch, loc_src, tim_src, mask_day, mask_traj = data_batch
    B, n_day, T_src = loc_src.shape
    D = params["loc_embedder"].shape[1]
    V = params["W_dec"].shape[1]

    # Embedding gathers stay in XLA.
    # TODO(synk): at production sizes, move the decoder-path gather into the
    # kernel via PrefetchScalarGridSpec + pl.Element row-gather.
    loc_emb = jnp.take(params["loc_embedder"], loc_src, axis=0)       # (B,nd,T,D)
    uid_embed = jnp.take(params["uid_embedder"], uid_batch, axis=0)   # (B,Du)

    # --- Kernel A: encoders + uid hid-mapper -------------------------------
    zs, zt = encoder_fused(loc_emb, tim_src, mask_traj, mask_day,
                           uid_embed, params)

    # --- Kernel B: SpatialDecoder + argmax(log_softmax) --------------------
    loc_tar_in = loc_tar[:, :-1]                                      # (B, L)
    L = loc_tar_in.shape[1]
    loc_tar_embed = jnp.take(params["loc_embedder"], loc_tar_in, axis=0)

    Vp = _round_up(V, 128)                      # lane-dense decoder output
    w_dec_p = jnp.zeros((D, Vp), jnp.bfloat16).at[:, :V].set(
        params["W_dec"].astype(jnp.bfloat16))
    b_dec_p = jnp.full((1, Vp), -1e30, jnp.float32).at[:, :V].set(
        params["b_dec"].reshape(1, V))

    logits_p, idx3 = spatial_decoder_fused(loc_tar_embed, zs, w_dec_p, b_dec_p)
    loc_chain_p = logits_p[:, :, :V]                                  # (B, L, V)
    loc_chain_idx = idx3.reshape(B, L)                                # (B, L) int32

    # --- Kernel C: LocCompressor + TemporalDecoder -------------------------
    comp_emb = jnp.take(params["loc_embedder"], loc_chain_idx[:, :-1], axis=0)
    tim_chain = loc_temporal_decoder_fused(comp_emb, zt, params)      # (B, L-1)

    # TODO(synk): eval-mode beam search (in-place chain writes, topk/sort over
    # hypotheses) is not implemented here; only the train path is reproduced.
    return loc_chain_p, tim_chain


# ---------------------------------------------------------------------------
# Deterministic parameter init + demo
# ---------------------------------------------------------------------------

def init_params(key, *, lid_size, num_user, dim_embed_loc, dim_embed_uid,
                n_day, dim_com_list, dim_zt, dim_td_hidden):
    V = lid_size + 3
    ks = jax.random.split(key, 16)

    def w(k, shape):
        fan_in = shape[0]
        return jax.random.normal(k, shape, jnp.float32) / jnp.sqrt(fan_in)

    c1, c2 = dim_com_list
    return dict(
        loc_embedder=w(ks[0], (V, dim_embed_loc)),
        uid_embedder=w(ks[1], (num_user, dim_embed_uid)),
        W_hid=w(ks[2], (dim_embed_loc + dim_embed_uid, dim_embed_loc)),
        b_hid=jnp.zeros((dim_embed_loc,), jnp.float32),
        W_te=w(ks[3], (dim_embed_loc + n_day, dim_zt)),
        b_te=jnp.zeros((dim_zt,), jnp.float32),
        W_dec=w(ks[4], (dim_embed_loc, V)),
        b_dec=jnp.zeros((V,), jnp.float32),
        W_c1=w(ks[5], (dim_embed_loc, c1)),
        b_c1=jnp.zeros((c1,), jnp.float32),
        W_c2=w(ks[6], (c1, c2)),
        b_c2=jnp.zeros((c2,), jnp.float32),
        W_ztp=w(ks[7], (dim_zt, dim_td_hidden)),
        b_ztp=jnp.zeros((dim_td_hidden,), jnp.float32),
        W_td1=w(ks[8], (c2, dim_td_hidden)),
        b_td1=jnp.zeros((dim_td_hidden,), jnp.float32),
        W_td2=w(ks[9], (dim_td_hidden, 1)),
        b_td2=jnp.zeros((1,), jnp.float32),
    )


if __name__ == "__main__":
    key = jax.random.PRNGKey(0)

    # small synthetic config
    B, n_day, T_src = 2, 2, 8
    traj_len = 8
    lid_size = 29                 # vocab = lid_size + 3 = 32
    num_user = 10
    dim_embed_loc = 32
    dim_embed_uid = 16
    dim_com_list = [16, 8]
    dim_zt = 32
    dim_td_hidden = 32

    pkey, dkey = jax.random.split(key)
    params = init_params(
        pkey, lid_size=lid_size, num_user=num_user,
        dim_embed_loc=dim_embed_loc, dim_embed_uid=dim_embed_uid,
        n_day=n_day, dim_com_list=dim_com_list,
        dim_zt=dim_zt, dim_td_hidden=dim_td_hidden,
    )

    k1, k2, k3, k4 = jax.random.split(dkey, 4)
    uid_batch = jax.random.randint(k1, (B,), 0, num_user)
    attr_batch = jnp.zeros((B, 4), jnp.float32)                    # unused attrs
    loc_src = jax.random.randint(k2, (B, n_day, T_src), 1, lid_size + 1)
    tim_src = jax.random.uniform(k3, (B, n_day, T_src), jnp.float32)
    mask_day = jnp.ones((B, n_day), jnp.float32)
    mask_traj = jnp.concatenate(
        [jnp.ones((B, n_day, T_src - 1), jnp.float32),
         jnp.zeros((B, n_day, 1), jnp.float32)], axis=-1)
    loc_tar = jax.random.randint(k4, (B, traj_len), 1, lid_size + 1)

    data_batch = (uid_batch, attr_batch, loc_src, tim_src, mask_day, mask_traj)

    loc_chain_p, tim_chain = stdhmp_forward(params, data_batch, loc_tar)
    jax.block_until_ready(loc_chain_p)
    jax.block_until_ready(tim_chain)

    assert loc_chain_p.shape == (B, traj_len - 1, lid_size + 3)
    assert tim_chain.shape == (B, traj_len - 2)
    assert jnp.all(jnp.isfinite(loc_chain_p))
    assert jnp.all(jnp.isfinite(tim_chain))
    print("KERNEL_OK")
</pallas_src>

<mosaic_0001>
module attributes {stable_mosaic.version = 11 : i64} {
  func.func @_encoder_kernel(%arg0: i32, %arg1: memref<2x2x8x32xf32, #tpu.memory_space<vmem>>, %arg2: memref<2x2x8x1xf32, #tpu.memory_space<vmem>>, %arg3: memref<2x2x8xf32, #tpu.memory_space<vmem>>, %arg4: memref<2x2x8xf32, #tpu.memory_space<vmem>>, %arg5: memref<2x2x1xf32, #tpu.memory_space<vmem>>, %arg6: memref<2x16xf32, #tpu.memory_space<vmem>>, %arg7: memref<32x32xf32, #tpu.memory_space<vmem>>, %arg8: memref<2x32xf32, #tpu.memory_space<vmem>>, %arg9: memref<1x32xf32, #tpu.memory_space<vmem>>, %arg10: memref<32x32xf32, #tpu.memory_space<vmem>>, %arg11: memref<16x32xf32, #tpu.memory_space<vmem>>, %arg12: memref<1x32xf32, #tpu.memory_space<vmem>>, %arg13: memref<2x32xf32, #tpu.memory_space<vmem>>, %arg14: memref<2x32xf32, #tpu.memory_space<vmem>>) attributes {dimension_semantics = [#tpu.dimension_semantics<arbitrary>], iteration_bounds = array<i64: 1>, scalar_prefetch = 0 : i64, scratch_operands = 0 : i64, tpu.core_type = #tpu.core_type<tc>, window_params = [{pipeline_mode = #tpu.pipeline_mode<synchronous>, transform_indices = @transform_0, window_bounds = array<i64: 2, 2, 8, 32>}, {pipeline_mode = #tpu.pipeline_mode<synchronous>, transform_indices = @transform_1, window_bounds = array<i64: 2, 2, 8, 1>}, {pipeline_mode = #tpu.pipeline_mode<synchronous>, transform_indices = @transform_2, window_bounds = array<i64: 2, 2, 8>}, {pipeline_mode = #tpu.pipeline_mode<synchronous>, transform_indices = @transform_3, window_bounds = array<i64: 2, 2, 8>}, {pipeline_mode = #tpu.pipeline_mode<synchronous>, transform_indices = @transform_4, window_bounds = array<i64: 2, 2, 1>}, {pipeline_mode = #tpu.pipeline_mode<synchronous>, transform_indices = @transform_5, window_bounds = array<i64: 2, 16>}, {pipeline_mode = #tpu.pipeline_mode<synchronous>, transform_indices = @transform_6, window_bounds = array<i64: 32, 32>}, {pipeline_mode = #tpu.pipeline_mode<synchronous>, transform_indices = @transform_7, window_bounds = array<i64: 2, 32>}, {pipeline_mode = #tpu.pipeline_mode<synchronous>, transform_indices = @transform_8, window_bounds = array<i64: 1, 32>}, {pipeline_mode = #tpu.pipeline_mode<synchronous>, transform_indices = @transform_9, window_bounds = array<i64: 32, 32>}, {pipeline_mode = #tpu.pipeline_mode<synchronous>, transform_indices = @transform_10, window_bounds = array<i64: 16, 32>}, {pipeline_mode = #tpu.pipeline_mode<synchronous>, transform_indices = @transform_11, window_bounds = array<i64: 1, 32>}, {pipeline_mode = #tpu.pipeline_mode<synchronous>, transform_indices = @transform_12, window_bounds = array<i64: 2, 32>}, {pipeline_mode = #tpu.pipeline_mode<synchronous>, transform_indices = @transform_13, window_bounds = array<i64: 2, 32>}]} {
    %c0 = arith.constant 0 : index
    %c0_0 = arith.constant 0 : index
    %c0_1 = arith.constant 0 : index
    %c0_2 = arith.constant 0 : index
    %0 = vector.load %arg1[%c0, %c0_0, %c0_1, %c0_2] : memref<2x2x8x32xf32, #tpu.memory_space<vmem>>, vector<2x2x8x32xf32>
    %c0_3 = arith.constant 0 : index
    %c0_4 = arith.constant 0 : index
    %c0_5 = arith.constant 0 : index
    %c0_6 = arith.constant 0 : index
    %1 = vector.load %arg2[%c0_3, %c0_4, %c0_5, %c0_6] : memref<2x2x8x1xf32, #tpu.memory_space<vmem>>, vector<2x2x8x1xf32>
    %c0_7 = arith.constant 0 : index
    %c0_8 = arith.constant 0 : index
    %c0_9 = arith.constant 0 : index
    %2 = vector.load %arg3[%c0_7, %c0_8, %c0_9] : memref<2x2x8xf32, #tpu.memory_space<vmem>>, vector<2x2x8xf32>
    %c0_10 = arith.constant 0 : index
    %c0_11 = arith.constant 0 : index
    %c0_12 = arith.constant 0 : index
    %3 = vector.load %arg4[%c0_10, %c0_11, %c0_12] : memref<2x2x8xf32, #tpu.memory_space<vmem>>, vector<2x2x8xf32>
    %c0_13 = arith.constant 0 : index
    %c0_14 = arith.constant 0 : index
    %c0_15 = arith.constant 0 : index
    %4 = vector.load %arg5[%c0_13, %c0_14, %c0_15] : memref<2x2x1xf32, #tpu.memory_space<vmem>>, vector<2x2x1xf32>
    %cst = arith.constant dense<0.000000e+00> : vector<2x2xf32>
    %5 = vector.multi_reduction <add>, %2, %cst [2] : vector<2x2x8xf32> to vector<2x2xf32>
    %6 = vector.shape_cast %5 : vector<2x2xf32> to vector<2x2x1xf32>
    %cst_16 = arith.constant 1.000000e+00 : f32
    %7 = vector.broadcast %cst_16 : f32 to vector<2x2x1xf32>
    %8 = arith.maximumf %6, %7 : vector<2x2x1xf32>
    %9 = vector.broadcast %1 : vector<2x2x8x1xf32> to vector<2x2x8x32xf32>
    %10 = arith.mulf %0, %9 : vector<2x2x8x32xf32>
    %cst_17 = arith.constant dense<0.000000e+00> : vector<2x2x32xf32>
    %11 = vector.multi_reduction <add>, %10, %cst_17 [2] : vector<2x2x8x32xf32> to vector<2x2x32xf32>
    %12 = vector.broadcast %8 : vector<2x2x1xf32> to vector<2x2x32xf32>
    %13 = arith.divf %11, %12 : vector<2x2x32xf32>
    %cst_18 = arith.constant dense<0.000000e+00> : vector<2x1xf32>
    %14 = vector.multi_reduction <add>, %4, %cst_18 [1] : vector<2x2x1xf32> to vector<2x1xf32>
    %cst_19 = arith.constant 1.000000e+00 : f32
    %15 = vector.broadcast %cst_19 : f32 to vector<2x1xf32>
    %16 = arith.maximumf %14, %15 : vector<2x1xf32>
    %17 = vector.broadcast %4 : vector<2x2x1xf32> to vector<2x2x32xf32>
    %18 = arith.mulf %13, %17 : vector<2x2x32xf32>
    %cst_20 = arith.constant dense<0.000000e+00> : vector<2x32xf32>
    %19 = vector.multi_reduction <add>, %18, %cst_20 [1] : vector<2x2x32xf32> to vector<2x32xf32>
    %20 = vector.broadcast %16 : vector<2x1xf32> to vector<2x32xf32>
    %21 = arith.divf %19, %20 : vector<2x32xf32>
    %22 = arith.mulf %3, %2 : vector<2x2x8xf32>
    %cst_21 = arith.constant dense<0.000000e+00> : vector<2x2xf32>
    %23 = vector.multi_reduction <add>, %22, %cst_21 [2] : vector<2x2x8xf32> to vector<2x2xf32>
    %24 = vector.shape_cast %23 : vector<2x2xf32> to vector<2x2x1xf32>
    %25 = arith.divf %24, %8 : vector<2x2x1xf32>
    %c0_22 = arith.constant 0 : index
    %c0_23 = arith.constant 0 : index
    %26 = vector.load %arg8[%c0_22, %c0_23] : memref<2x32xf32, #tpu.memory_space<vmem>>, vector<2x32xf32>
    %27 = vector.shape_cast %26 : vector<2x32xf32> to vector<1x2x32xf32>
    %28 = vector.broadcast %25 : vector<2x2x1xf32> to vector<2x2x32xf32>
    %29 = vector.broadcast %27 : vector<1x2x32xf32> to vector<2x2x32xf32>
    %30 = arith.mulf %28, %29 : vector<2x2x32xf32>
    %cst_24 = arith.constant dense<0.000000e+00> : vector<2x32xf32>
    %31 = vector.multi_reduction <add>, %30, %cst_24 [1] : vector<2x2x32xf32> to vector<2x32xf32>
    %c0_25 = arith.constant 0 : index
    %c0_26 = arith.constant 0 : index
    %32 = vector.load %arg7[%c0_25, %c0_26] : memref<32x32xf32, #tpu.memory_space<vmem>>, vector<32x32xf32>
    %cst_27 = arith.constant dense<0.000000e+00> : vector<2x32xf32>
    %33 = tpu.matmul %21, %32, %cst_27 {dimension_numbers = #tpu.dot_dimension_numbers<[1], [0], [0], [1], [0, 0, 1, 1], [], []>} : vector<2x32xf32>, vector<32x32xf32>, vector<2x32xf32> -> vector<2x32xf32>
    %34 = arith.addf %33, %31 : vector<2x32xf32>
    %c0_28 = arith.constant 0 : index
    %c0_29 = arith.constant 0 : index
    %35 = vector.load %arg9[%c0_28, %c0_29] : memref<1x32xf32, #tpu.memory_space<vmem>>, vector<1x32xf32>
    %36 = vector.broadcast %35 : vector<1x32xf32> to vector<2x32xf32>
    %37 = arith.addf %34, %36 : vector<2x32xf32>
    %38 = math.tanh %37 : vector<2x32xf32>
    %c0_30 = arith.constant 0 : index
    %c0_31 = arith.constant 0 : index
    %39 = vector.load %arg14[%c0_30, %c0_31] : memref<2x32xf32, #tpu.memory_space<vmem>>, vector<2x32xf32>
    tpu.vector_store %arg14[%c0_30, %c0_31], %38 {strides = array<i32>} : memref<2x32xf32, #tpu.memory_space<vmem>>, vector<2x32xf32>,
    %c0_32 = arith.constant 0 : index
    %c0_33 = arith.constant 0 : index
    %40 = vector.load %arg6[%c0_32, %c0_33] : memref<2x16xf32, #tpu.memory_space<vmem>>, vector<2x16xf32>
    %c0_34 = arith.constant 0 : index
    %c0_35 = arith.constant 0 : index
    %41 = vector.load %arg10[%c0_34, %c0_35] : memref<32x32xf32, #tpu.memory_space<vmem>>, vector<32x32xf32>
    %cst_36 = arith.constant dense<0.000000e+00> : vector<2x32xf32>
    %42 = tpu.matmul %21, %41, %cst_36 {dimension_numbers = #tpu.dot_dimension_numbers<[1], [0], [0], [1], [0, 0, 1, 1], [], []>} : vector<2x32xf32>, vector<32x32xf32>, vector<2x32xf32> -> vector<2x32xf32>
    %c0_37 = arith.constant 0 : index
    %c0_38 = arith.constant 0 : index
    %43 = vector.load %arg11[%c0_37, %c0_38] : memref<16x32xf32, #tpu.memory_space<vmem>>, vector<16x32xf32>
    %cst_39 = arith.constant dense<0.000000e+00> : vector<2x32xf32>
    %44 = tpu.matmul %40, %43, %cst_39 {dimension_numbers = #tpu.dot_dimension_numbers<[1], [0], [0], [1], [0, 0, 1, 1], [], []>} : vector<2x16xf32>, vector<16x32xf32>, vector<2x32xf32> -> vector<2x32xf32>
    %45 = arith.addf %42, %44 : vector<2x32xf32>
    %c0_40 = arith.constant 0 : index
    %c0_41 = arith.constant 0 : index
    %46 = vector.load %arg12[%c0_40, %c0_41] : memref<1x32xf32, #tpu.memory_space<vmem>>, vector<1x32xf32>
    %47 = vector.broadcast %46 : vector<1x32xf32> to vector<2x32xf32>
    %48 = arith.addf %45, %47 : vector<2x32xf32>
    %c0_42 = arith.constant 0 : index
    %c0_43 = arith.constant 0 : index
    %49 = vector.load %arg13[%c0_42, %c0_43] : memref<2x32xf32, #tpu.memory_space<vmem>>, vector<2x32xf32>
    tpu.vector_store %arg13[%c0_42, %c0_43], %48 {strides = array<i32>} : memref<2x32xf32, #tpu.memory_space<vmem>>, vector<2x32xf32>,
    return
  }
  func.func @transform_0(%arg0: i32) -> (i32, i32, i32, i32) {
    %c0_i32 = arith.constant 0 : i32
    %c0_i32_0 = arith.constant 0 : i32
    %c0_i32_1 = arith.constant 0 : i32
    %c0_i32_2 = arith.constant 0 : i32
    %c0_i32_3 = arith.constant 0 : i32
    return %c0_i32, %c0_i32_0, %c0_i32_1, %c0_i32_2 : i32, i32, i32, i32
  }
  func.func @transform_1(%arg0: i32) -> (i32, i32, i32, i32) {
    %c0_i32 = arith.constant 0 : i32
    %c0_i32_0 = arith.constant 0 : i32
    %c0_i32_1 = arith.constant 0 : i32
    %c0_i32_2 = arith.constant 0 : i32
    %c0_i32_3 = arith.constant 0 : i32
    return %c0_i32, %c0_i32_0, %c0_i32_1, %c0_i32_2 : i32, i32, i32, i32
  }
  func.func @transform_2(%arg0: i32) -> (i32, i32, i32) {
    %c0_i32 = arith.constant 0 : i32
    %c0_i32_0 = arith.constant 0 : i32
    %c0_i32_1 = arith.constant 0 : i32
    %c0_i32_2 = arith.constant 0 : i32
    return %c0_i32, %c0_i32_0, %c0_i32_1 : i32, i32, i32
  }
  func.func @transform_3(%arg0: i32) -> (i32, i32, i32) {
    %c0_i32 = arith.constant 0 : i32
    %c0_i32_0 = arith.constant 0 : i32
    %c0_i32_1 = arith.constant 0 : i32
    %c0_i32_2 = arith.constant 0 : i32
    return %c0_i32, %c0_i32_0, %c0_i32_1 : i32, i32, i32
  }
  func.func @transform_4(%arg0: i32) -> (i32, i32, i32) {
    %c0_i32 = arith.constant 0 : i32
    %c0_i32_0 = arith.constant 0 : i32
    %c0_i32_1 = arith.constant 0 : i32
    %c0_i32_2 = arith.constant 0 : i32
    return %c0_i32, %c0_i32_0, %c0_i32_1 : i32, i32, i32
  }
  func.func @transform_5(%arg0: i32) -> (i32, i32) {
    %c0_i32 = arith.constant 0 : i32
    %c0_i32_0 = arith.constant 0 : i32
    %c0_i32_1 = arith.constant 0 : i32
    return %c0_i32, %c0_i32_0 : i32, i32
  }
  func.func @transform_6(%arg0: i32) -> (i32, i32) {
    %c0_i32 = arith.constant 0 : i32
    %c0_i32_0 = arith.constant 0 : i32
    %c0_i32_1 = arith.constant 0 : i32
    return %c0_i32, %c0_i32_0 : i32, i32
  }
  func.func @transform_7(%arg0: i32) -> (i32, i32) {
    %c0_i32 = arith.constant 0 : i32
    %c0_i32_0 = arith.constant 0 : i32
    %c0_i32_1 = arith.constant 0 : i32
    return %c0_i32, %c0_i32_0 : i32, i32
  }
  func.func @transform_8(%arg0: i32) -> (i32, i32) {
    %c0_i32 = arith.constant 0 : i32
    %c0_i32_0 = arith.constant 0 : i32
    %c0_i32_1 = arith.constant 0 : i32
    return %c0_i32, %c0_i32_0 : i32, i32
  }
  func.func @transform_9(%arg0: i32) -> (i32, i32) {
    %c0_i32 = arith.constant 0 : i32
    %c0_i32_0 = arith.constant 0 : i32
    %c0_i32_1 = arith.constant 0 : i32
    return %c0_i32, %c0_i32_0 : i32, i32
  }
  func.func @transform_10(%arg0: i32) -> (i32, i32) {
    %c0_i32 = arith.constant 0 : i32
    %c0_i32_0 = arith.constant 0 : i32
    %c0_i32_1 = arith.constant 0 : i32
    return %c0_i32, %c0_i32_0 : i32, i32
  }
  func.func @transform_11(%arg0: i32) -> (i32, i32) {
    %c0_i32 = arith.constant 0 : i32
    %c0_i32_0 = arith.constant 0 : i32
    %c0_i32_1 = arith.constant 0 : i32
    return %c0_i32, %c0_i32_0 : i32, i32
  }
  func.func @transform_12(%arg0: i32) -> (i32, i32) {
    %c0_i32 = arith.constant 0 : i32
    %c0_i32_0 = arith.constant 0 : i32
    %c0_i32_1 = arith.constant 0 : i32
    return %c0_i32, %c0_i32_0 : i32, i32
  }
  func.func @transform_13(%arg0: i32) -> (i32, i32) {
    %c0_i32 = arith.constant 0 : i32
    %c0_i32_0 = arith.constant 0 : i32
    %c0_i32_1 = arith.constant 0 : i32
    return %c0_i32, %c0_i32_0 : i32, i32
  }
}

</mosaic_0001>

<llo_original>
// kernel: tpu_custom_call.1
$region0: #{tpu_custom_call.1}
  #allocation0 [shape = 'u32[]', space=smem, size = 0x4, offset = 0x4, fixed_abs, tag = 'smem constant byte address 0x4 - core index']
  #allocation1 [shape = 'u32[144,128]{1,0:T(1,128)}', space=vmem, size = 0x12000, scoped, tag = 'internal scratch']
  %s0 = inlined_call_operand.vmem [shape: f32[2,2,8,32], index: 0, kind: input, shape index: {}]
  %s1 = inlined_call_operand.vmem [shape: f32[2,2,8,1], index: 1, kind: input, shape index: {}]
  %s2 = inlined_call_operand.hbm [shape: f32[2,2,8], index: 2, kind: input, shape index: {}]
  %s3 = inlined_call_operand.hbm [shape: f32[2,2,8], index: 3, kind: input, shape index: {}]
  %s4 = inlined_call_operand.vmem [shape: f32[2,2,1], index: 4, kind: input, shape index: {}]
  %s5 = inlined_call_operand.hbm [shape: f32[2,16], index: 5, kind: input, shape index: {}]
  %s6 = inlined_call_operand.vmem [shape: f32[32,32], index: 6, kind: input, shape index: {}]
  %s7 = inlined_call_operand.vmem [shape: f32[2,32], index: 7, kind: input, shape index: {}]
  %s8 = inlined_call_operand.vmem [shape: f32[1,32], index: 8, kind: input, shape index: {}]
  %s9 = inlined_call_operand.hbm [shape: f32[32,32], index: 9, kind: input, shape index: {}]
  %s10 = inlined_call_operand.hbm [shape: f32[16,32], index: 10, kind: input, shape index: {}]
  %s11 = inlined_call_operand.vmem [shape: f32[1,32], index: 11, kind: input, shape index: {}]
  %s12 = inlined_call_operand.hbm [shape: f32[2,32], index: 12, kind: output, shape index: {0}]
  %s13 = inlined_call_operand.hbm [shape: f32[2,32], index: 13, kind: output, shape index: {1}]
  %14 = xla_tuple %s12, %s13
  %s15 = sld [smem:[#allocation0]]
  $region86: #{tpu_custom_call.1} parent=0
    _
  %s17 = ssub.s32 1, %s15
  %s18 = scalar_select 0, %s17, %s15
  $region1: #{tpu_custom_call.1} parent=0
    #allocation2 [shape = 'u8[2048]{0}', space=vmem, size = 0x800, scoped, tag = 'input window, operand 2, single buffered']
    #allocation3 [shape = 's32[1]{0}', space=sflag, size = 0x4, scoped, tag = 'scoped memory for tpu_custom_call.1']
    #allocation4 [shape = 's32[1]{0}', space=sflag, size = 0x4, scoped, tag = 'scoped memory for tpu_custom_call.1']
    #allocation5 [shape = 'u8[2048]{0}', space=vmem, size = 0x800, scoped, tag = 'input window, operand 3, single buffered']
    #allocation6 [shape = 's32[1]{0}', space=sflag, size = 0x4, scoped, tag = 'scoped memory for tpu_custom_call.1']
    #allocation7 [shape = 'u8[1024]{0}', space=vmem, size = 0x400, scoped, tag = 'input window, operand 5, single buffered']
    #allocation8 [shape = 'u8[16384]{0}', space=vmem, size = 0x4000, scoped, tag = 'input window, operand 9, single buffered']
    #allocation9 [shape = 's32[1]{0}', space=sflag, size = 0x4, scoped, tag = 'scoped memory for tpu_custom_call.1']
    #allocation10 [shape = 'u8[8192]{0}', space=vmem, size = 0x2000, scoped, tag = 'input window, operand 10, single buffered']
    #allocation11 [shape = 'u8[1024]{0}', space=vmem, size = 0x400, scoped, tag = 'output window, operand 0, single buffered']
    #allocation12 [shape = 'u8[1024]{0}', space=vmem, size = 0x400, scoped, tag = 'output window, operand 1, single buffered']
    #allocation13 [shape = 's32[1]{0}', space=sflag, size = 0x4, scoped, tag = 'scoped memory for tpu_custom_call.1']
    %19 = vsyncpa [#allocation3], 0
    %20 = vsyncpa [#allocation6], 0
    %21 = vsyncpa [#allocation9], 0
    %22 = vsyncpa [#allocation4], 0
    %23 = vsyncpa [#allocation13], 0
    // Predicated region
    $region2: #{tpu_custom_call.1} parent=1 // pred_check
      _
    $region3: #{tpu_custom_call.1} parent=1 // pred_check_branch
      %25 = sbr.rel (0) target = $region5
    $region4: #{tpu_custom_call.1} parent=1 // pred_region
      _
    $region5: #{tpu_custom_call.1} parent=1 // pred_fallthru
      _
    // Predicated region
    $region6: #{tpu_custom_call.1} parent=1 // pred_check
      _
    $region7: #{tpu_custom_call.1} parent=1 // pred_check_branch
      %27 = sbr.rel (0) target = $region9
    $region8: #{tpu_custom_call.1} parent=1 // pred_region
      _
    $region9: #{tpu_custom_call.1} parent=1 // pred_fallthru
      _
    // Predicated region
    $region10: #{tpu_custom_call.1} parent=1 // pred_check
      _
    $region11: #{tpu_custom_call.1} parent=1 // pred_check_branch
      %29 = sbr.rel (0) target = $region13
    $region12: #{tpu_custom_call.1} parent=1 // pred_region
      %s31 = ssub.s32 64, 64
      %32 = vsyncadd [#allocation3], %s31
      %s33 = sshll.u32 [#allocation2], 4
      %s34 = int_to_ptr.vmem [resolvable:$true] %s33
      %39 = dma.hbm_to_vmem [thread:$0]  %s2, 64, %s34, [#allocation3], 32, 32, 2
    $region13: #{tpu_custom_call.1} parent=1 // pred_fallthru
      _
    // Predicated region
    $region14: #{tpu_custom_call.1} parent=1 // pred_check
      _
    $region15: #{tpu_custom_call.1} parent=1 // pred_check_branch
      %41 = sbr.rel (0) target = $region17
    $region16: #{tpu_custom_call.1} parent=1 // pred_region
      %s43 = ssub.s32 64, 64
      %44 = vsyncadd [#allocation6], %s43
      %s45 = sshll.u32 [#allocation5], 4
      %s46 = int_to_ptr.vmem [resolvable:$true] %s45
      %51 = dma.hbm_to_vmem [thread:$0]  %s3, 64, %s46, [#allocation6], 32, 32, 2
    $region17: #{tpu_custom_call.1} parent=1 // pred_fallthru
      _
    // Predicated region
    $region18: #{tpu_custom_call.1} parent=1 // pred_check
      _
    $region19: #{tpu_custom_call.1} parent=1 // pred_check_branch
      %53 = sbr.rel (0) target = $region21
    $region20: #{tpu_custom_call.1} parent=1 // pred_region
      _
    $region21: #{tpu_custom_call.1} parent=1 // pred_fallthru
      _
    // Predicated region
    $region22: #{tpu_custom_call.1} parent=1 // pred_check
      _
    $region23: #{tpu_custom_call.1} parent=1 // pred_check_branch
      %55 = sbr.rel (0) target = $region25
    $region24: #{tpu_custom_call.1} parent=1 // pred_region
      %s57 = ssub.s32 32, 32
      %58 = vsyncadd [#allocation6], %s57
      %s60 = sshll.u32 [#allocation7], 4
      %s61 = int_to_ptr.vmem [resolvable:$true] %s60
      %63 = dma.hbm_to_vmem [thread:$0]  %s5, 32, %s61, [#allocation6]
    $region25: #{tpu_custom_call.1} parent=1 // pred_fallthru
      _
    // Predicated region
    $region26: #{tpu_custom_call.1} parent=1 // pred_check
      _
    $region27: #{tpu_custom_call.1} parent=1 // pred_check_branch
      %65 = sbr.rel (0) target = $region29
    $region28: #{tpu_custom_call.1} parent=1 // pred_region
      _
    $region29: #{tpu_custom_call.1} parent=1 // pred_fallthru
      _
    // Predicated region
    $region30: #{tpu_custom_call.1} parent=1 // pred_check
      _
    $region31: #{tpu_custom_call.1} parent=1 // pred_check_branch
      %67 = sbr.rel (0) target = $region33
    $region32: #{tpu_custom_call.1} parent=1 // pred_region
      _
    $region33: #{tpu_custom_call.1} parent=1 // pred_fallthru
      _
    // Predicated region
    $region34: #{tpu_custom_call.1} parent=1 // pred_check
      _
    $region35: #{tpu_custom_call.1} parent=1 // pred_check_branch
      %69 = sbr.rel (0) target = $region37
    $region36: #{tpu_custom_call.1} parent=1 // pred_region
      _
    $region37: #{tpu_custom_call.1} parent=1 // pred_fallthru
      _
    // Predicated region
    $region38: #{tpu_custom_call.1} parent=1 // pred_check
      _
    $region39: #{tpu_custom_call.1} parent=1 // pred_check_branch
      %71 = sbr.rel (0) target = $region41
    $region40: #{tpu_custom_call.1} parent=1 // pred_region
      %s73 = ssub.s32 512, 512
      %74 = vsyncadd [#allocation9], %s73
      %s75 = sshll.u32 [#allocation8], 4
      %s76 = int_to_ptr.vmem [resolvable:$true] %s75
      %81 = dma.hbm_to_vmem [thread:$0]  %s9, 512, %s76, [#allocation9], 128, 128, 8
    $region41: #{tpu_custom_call.1} parent=1 // pred_fallthru
      _
    // Predicated region
    $region42: #{tpu_custom_call.1} parent=1 // pred_check
      _
    $region43: #{tpu_custom_call.1} parent=1 // pred_check_branch
      %83 = sbr.rel (0) target = $region45
    $region44: #{tpu_custom_call.1} parent=1 // pred_region
      %s85 = ssub.s32 256, 256
      %86 = vsyncadd [#allocation9], %s85
      %s87 = sshll.u32 [#allocation10], 4
      %s88 = int_to_ptr.vmem [resolvable:$true] %s87
      %93 = dma.hbm_to_vmem [thread:$0]  %s10, 256, %s88, [#allocation9], 128, 128, 8
    $region45: #{tpu_custom_call.1} parent=1 // pred_fallthru
      _
    // Predicated region
    $region46: #{tpu_custom_call.1} parent=1 // pred_check
      _
    $region47: #{tpu_custom_call.1} parent=1 // pred_check_branch
      %95 = sbr.rel (0) target = $region49
    $region48: #{tpu_custom_call.1} parent=1 // pred_region
      _
    $region49: #{tpu_custom_call.1} parent=1 // pred_fallthru
      _
    // Predicated region
    $region50: #{tpu_custom_call.1} parent=1 // pred_check
      _
    $region51: #{tpu_custom_call.1} parent=1 // pred_check_branch
      %97 = sbr.rel (0) target = $region53
    $region52: #{tpu_custom_call.1} parent=1 // pred_region
      %98 = dma.done [#allocation3], 64
    $region53: #{tpu_custom_call.1} parent=1 // pred_fallthru
      _
    // Predicated region
    $region54: #{tpu_custom_call.1} parent=1 // pred_check
      _
    $region55: #{tpu_custom_call.1} parent=1 // pred_check_branch
      %100 = sbr.rel (0) target = $region57
    $region56: #{tpu_custom_call.1} parent=1 // pred_region
      %101 = dma.done [#allocation6], 64
    $region57: #{tpu_custom_call.1} parent=1 // pred_fallthru
      _
    // Predicated region
    $region58: #{tpu_custom_call.1} parent=1 // pred_check
      _
    $region59: #{tpu_custom_call.1} parent=1 // pred_check_branch
      %103 = sbr.rel (0) target = $region61
    $region60: #{tpu_custom_call.1} parent=1 // pred_region
      %104 = dma.done [#allocation6], 32
    $region61: #{tpu_custom_call.1} parent=1 // pred_fallthru
      _
    // Predicated region
    $region62: #{tpu_custom_call.1} parent=1 // pred_check
      _
    $region63: #{tpu_custom_call.1} parent=1 // pred_check_branch
      %106 = sbr.rel (0) target = $region65
    $region64: #{tpu_custom_call.1} parent=1 // pred_region
      %107 = dma.done [#allocation9], 512
    $region65: #{tpu_custom_call.1} parent=1 // pred_fallthru
      _
    // Predicated region
    $region66: #{tpu_custom_call.1} parent=1 // pred_check
      _
    $region67: #{tpu_custom_call.1} parent=1 // pred_check_branch
      %109 = sbr.rel (0) target = $region69
    $region68: #{tpu_custom_call.1} parent=1 // pred_region
      %110 = dma.done [#allocation9], 256
    $region69: #{tpu_custom_call.1} parent=1 // pred_fallthru
      _
    %v111 = vld [vmem:[%s0] sm:$0xff]
    %v112 = vld [vmem:[%s0 + $0x8] sm:$0xff]
    %v113 = vld [vmem:[%s0 + $0x10] sm:$0xff]
    %v114 = vld [vmem:[%s0 + $0x18] sm:$0xff]
    %v115 = vld [vmem:[%s1] sm:$0xff]
    %v116 = vld [vmem:[%s1 + $0x8] sm:$0xff]
    %v117 = vld [vmem:[%s1 + $0x10] sm:$0xff]
    %v118 = vld [vmem:[%s1 + $0x18] sm:$0xff]
    %v119 = vld [vmem:[#allocation2] sm:$0x3]
    %v120 = vld [vmem:[#allocation2 + $0x2] sm:$0x3]
    %v121 = vld [vmem:[#allocation5] sm:$0x3]
    %v122 = vld [vmem:[#allocation5 + $0x2] sm:$0x3]
    %v123 = vld [vmem:[%s4] sm:$0x3]
    %v124 = vld [vmem:[%s4 + $0x2] sm:$0x3]
    %vm125 = vcmask 58368
    %v126 = vsel %vm125, %v119, 0.0
    %127 = vadd.xlane.f32.xlu0 %v126
    %v128 = vpop.xlane.xlu0 %127
    %v129 = vsel %vm125, %v120, 0.0
    %130 = vadd.xlane.f32.xlu0 %v129
    %v131 = vpop.xlane.xlu0 %130
    %v132 = vmax.f32 %v128, 1.0
    %v133 = vmax.f32 %v131, 1.0
    %135 = vset.pattern.permute.xlu0 0
    %136 = vperm.xlu0 %135, %v115
    %v137 = vpop.permute.xlu0 %136
    %140 = vset.pattern.permute.xlu0 0
    %141 = vperm.xlu0 %140, %v116
    %v142 = vpop.permute.xlu0 %141
    %145 = vset.pattern.permute.xlu0 0
    %146 = vperm.xlu0 %145, %v117
    %v147 = vpop.permute.xlu0 %146
    %150 = vset.pattern.permute.xlu0 0
    %151 = vperm.xlu0 %150, %v118
    %v152 = vpop.permute.xlu0 %151
    %v154 = vmul.f32 %v111, %v137
    %v155 = vmul.f32 %v112, %v142
    %v156 = vmul.f32 %v113, %v147
    %v157 = vmul.f32 %v114, %v152
    %vm158 = vcmask 261120
    %v159 = vsel %vm158, %v154, 0.0
    %v160 = vrot.slane %v159, 4
    %v161 = vadd.f32 %v159, %v160
    %v162 = vrot.slane %v161, 2
    %v163 = vadd.f32 %v161, %v162
    %v164 = vrot.slane %v163, 1
    %v165 = vadd.f32 %v163, %v164
    %v166 = vsel %vm158, %v155, 0.0
    %v167 = vrot.slane %v166, 4
    %v168 = vadd.f32 %v166, %v167
    %v169 = vrot.slane %v168, 2
    %v170 = vadd.f32 %v168, %v169
    %v171 = vrot.slane %v170, 1
    %v172 = vadd.f32 %v170, %v171
    %v173 = vsel %vm158, %v156, 0.0
    %v174 = vrot.slane %v173, 4
    %v175 = vadd.f32 %v173, %v174
    %v176 = vrot.slane %v175, 2
    %v177 = vadd.f32 %v175, %v176
    %v178 = vrot.slane %v177, 1
    %v179 = vadd.f32 %v177, %v178
    %v180 = vsel %vm158, %v157, 0.0
    %v181 = vrot.slane %v180, 4
    %v182 = vadd.f32 %v180, %v181
    %v183 = vrot.slane %v182, 2
    %v184 = vadd.f32 %v182, %v183
    %v185 = vrot.slane %v184, 1
    %v186 = vadd.f32 %v184, %v185
    %v189 = vrot.slane %v132, 1
    %v190 = vrot.slane %v133, 1
    %v195 = vrcp.pop %v132
    %v196 = vmul.f32 %v165, %v195
    %v197 = vrcp.pop %v189
    %v198 = vmul.f32 %v172, %v197
    %v199 = vrcp.pop %v133
    %v200 = vmul.f32 %v179, %v199
    %v201 = vrcp.pop %v190
    %v202 = vmul.f32 %v186, %v201
    %vm203 = vcmask 1024
    %v204 = vsel %vm203, %v123, 0.0
    %v205 = vrot.slane %v204, 4
    %v206 = vadd.f32 %v204, %v205
    %v207 = vrot.slane %v206, 2
    %v208 = vadd.f32 %v206, %v207
    %v209 = vrot.slane %v208, 1
    %v210 = vadd.f32 %v208, %v209
    %v211 = vsel %vm203, %v124, 0.0
    %v212 = vrot.slane %v211, 4
    %v213 = vadd.f32 %v211, %v212
    %v214 = vrot.slane %v213, 2
    %v215 = vadd.f32 %v213, %v214
    %v216 = vrot.slane %v215, 1
    %v217 = vadd.f32 %v215, %v216
    %v218 = vmax.f32 %v210, 1.0
    %v219 = vmax.f32 %v217, 1.0
    %221 = vset.pattern.permute.xlu0 0
    %222 = vperm.xlu0 %221, %v123
    %v223 = vpop.permute.xlu0 %222
    %225 = vset.pattern.permute.xlu0 0
    %226 = vperm.xlu0 %225, %v124
    %v227 = vpop.permute.xlu0 %226
    %v228 = vrot.slane %v223, 1
    %v229 = vrot.slane %v227, 1
    %v234 = vmul.f32 %v196, %v223
    %v235 = vmul.f32 %v198, %v228
    %v236 = vmul.f32 %v200, %v227
    %v237 = vmul.f32 %v202, %v229
    %v242 = vrot.slane %v235, 7
    %vm243 = vcmask 1041409
    %v244 = vsel %vm243, %v242, %v234
    %v245 = vrot.slane %v237, 7
    %v246 = vsel %vm243, %v245, %v236
    %vm249 = vcmask 254976
    %v250 = vsel %vm249, %v244, 0.0
    %v251 = vrot.slane %v250, 4
    %v252 = vadd.f32 %v250, %v251
    %v253 = vrot.slane %v252, 2
    %v254 = vadd.f32 %v252, %v253
    %v255 = vrot.slane %v254, 1
    %v256 = vadd.f32 %v254, %v255
    %v257 = vsel %vm249, %v246, 0.0
    %v258 = vrot.slane %v257, 4
    %v259 = vadd.f32 %v257, %v258
    %v260 = vrot.slane %v259, 2
    %v261 = vadd.f32 %v259, %v260
    %v262 = vrot.slane %v261, 1
    %v263 = vadd.f32 %v261, %v262
    %265 = vset.pattern.permute.xlu0 0
    %266 = vperm.xlu0 %265, %v218
    %v267 = vpop.permute.xlu0 %266
    %270 = vset.pattern.permute.xlu0 0
    %271 = vperm.xlu0 %270, %v219
    %v272 = vpop.permute.xlu0 %271
    %v274 = vrcp.pop %v267
    %v275 = vmul.f32 %v256, %v274
    %v276 = vrcp.pop %v272
    %v277 = vmul.f32 %v263, %v276
    %v278 = vmul.f32 %v121, %v119
    %v279 = vmul.f32 %v122, %v120
    %v280 = vsel %vm125, %v278, 0.0
    %281 = vadd.xlane.f32.xlu0 %v280
    %v282 = vpop.xlane.xlu0 %281
    %v283 = vsel %vm125, %v279, 0.0
    %284 = vadd.xlane.f32.xlu0 %v283
    %v285 = vpop.xlane.xlu0 %284
    %v286 = vrcp.pop %v132
    %v287 = vmul.f32 %v282, %v286
    %v288 = vrcp.pop %v133
    %v289 = vmul.f32 %v285, %v288
    %v290 = vld [vmem:[%s7] sm:$0x3]
    %v291 = vmul.f32 %v287, %v290
    %v292 = vmul.f32 %v289, %v290
    %v293 = vsel %vm249, %v291, 0.0
    %v294 = vrot.slane %v293, 4
    %v295 = vadd.f32 %v293, %v294
    %v296 = vrot.slane %v295, 2
    %v297 = vadd.f32 %v295, %v296
    %v298 = vrot.slane %v297, 1
    %v299 = vadd.f32 %v297, %v298
    %v300 = vsel %vm249, %v292, 0.0
    %v301 = vrot.slane %v300, 4
    %v302 = vadd.f32 %v300, %v301
    %v303 = vrot.slane %v302, 2
    %v304 = vadd.f32 %v302, %v303
    %v305 = vrot.slane %v304, 1
    %v306 = vadd.f32 %v304, %v305
    %v307 = vld [vmem:[%s6] sm:$0xff]
    %v308 = vld [vmem:[%s6 + $0x8] sm:$0xff]
    %v309 = vld [vmem:[%s6 + $0x10] sm:$0xff]
    %v310 = vld [vmem:[%s6 + $0x18] sm:$0xff]
    %v313 = vrot.slane %v277, 7
    %v314 = vsel %vm243, %v313, %v275
    %v317 = vsel %vm243, %v306, %v299
    %v319 = vsel %vm158, %v314, 0
    %321 = vmatprep.subr.mxu0 0.0
    %322 = vmatpush1.msra.mxu0 %v307
    %323 = vmatprep.subr.mxu0 0.0
    %324 = vmatpush1.msra.mxu0 %v308
    %325 = vmatprep.subr.mxu0 0.0
    %326 = vmatpush1.msra.mxu0 %v309
    %327 = vmatprep.subr.mxu0 0.0
    %328 = vmatpush1.msra.mxu0 %v310
    %329 = vmatprep.subr.mxu0 0.0
    %330 = vmatpush1.msra.mxu0 0.0
    %331 = vmatprep.subr.mxu0 0.0
    %332 = vmatpush1.msra.mxu0 0.0
    %333 = vmatprep.subr.mxu0 0.0
    %334 = vmatpush1.msra.mxu0 0.0
    %335 = vmatprep.subr.mxu0 0.0
    %336 = vmatpush1.msra.mxu0 0.0
    %337 = vmatprep.subr.mxu0 0.0
    %338 = vmatpush1.msra.mxu0 0.0
    %339 = vmatprep.subr.mxu0 0.0
    %340 = vmatpush1.msra.mxu0 0.0
    %341 = vmatprep.subr.mxu0 0.0
    %342 = vmatpush1.msra.mxu0 0.0
    %343 = vmatprep.subr.mxu0 0.0
    %344 = vmatpush1.msra.mxu0 0.0
    %345 = vmatprep.subr.mxu0 0.0
    %346 = vmatpush1.msra.mxu0 0.0
    %347 = vmatprep.subr.mxu0 0.0
    %348 = vmatpush1.msra.mxu0 0.0
    %349 = vmatprep.subr.mxu0 0.0
    %350 = vmatpush1.msra.mxu0 0.0
    %351 = vmatprep.subr.mxu0 0.0
    %352 = vmatpush1.msra.mxu0 0.0
    %353 = vmatprep.subr.mxu0 0.0
    %354 = vmatpush1.msra.mxu0 0.0
    %355 = vmatprep.subr.mxu0 0.0
    %356 = vmatpush1.msra.mxu0 0.0
    %357 = vmatprep.subr.mxu0 0.0
    %358 = vmatpush1.msra.mxu0 0.0
    %359 = vmatprep.subr.mxu0 0.0
    %360 = vmatpush1.msra.mxu0 0.0
    %361 = vmatprep.subr.mxu0 0.0
    %362 = vmatpush1.msra.mxu0 0.0
    %363 = vmatprep.subr.mxu0 0.0
    %364 = vmatpush1.msra.mxu0 0.0
    %365 = vmatprep.subr.mxu0 0.0
    %366 = vmatpush1.msra.mxu0 0.0
    %367 = vmatprep.subr.mxu0 0.0
    %368 = vmatpush1.msra.mxu0 0.0
    %369 = vmatprep.subr.mxu0 0.0
    %370 = vmatpush1.msra.mxu0 0.0
    %371 = vmatprep.subr.mxu0 0.0
    %372 = vmatpush1.msra.mxu0 0.0
    %373 = vmatprep.subr.mxu0 0.0
    %374 = vmatpush1.msra.mxu0 0.0
    %375 = vmatprep.subr.mxu0 0.0
    %376 = vmatpush1.msra.mxu0 0.0
    %377 = vmatprep.subr.mxu0 0.0
    %378 = vmatpush1.msra.mxu0 0.0
    %379 = vmatprep.subr.mxu0 0.0
    %380 = vmatpush1.msra.mxu0 0.0
    %381 = vmatprep.subr.mxu0 0.0
    %382 = vmatpush1.msra.mxu0 0.0
    %383 = vmatprep.subr.mxu0 0.0
    %384 = vmatpush1.msra.mxu0 0.0
    %385 = vmatprep.mubr.f32.mxu0 0.0
    %386 = vmatmul.mubr.f32.gmra.mrb[0].mxu0 %v319
    %v387 = vpop.f32.mrb[0].mxu0
    %v388 = vadd.f32 %v317, %v387
    %v389 = vpop.f32.mrb[0].mxu0
    %390 = vdwg.mxu0
    %v391 = vld [vmem:[%s8] sm:$0x1]
    %v393 = vlaneseq
    %v394 = vshrl.u32 %v393, 7
    %v395 = vsub.s32 0, %v394
    %v396 = vrot.slane %v391, %v395
    %v398 = vadd.f32 %v388, %v396
    %v399 = vtanh.pop %v398
    %400 = vst.msk [vmem:[#allocation12] sm:$0x3] %vm249, %v399
    %v401 = vld [vmem:[#allocation7] sm:$0x3]
    %v402 = vld [vmem:[#allocation8] sm:$0xff]
    %v403 = vld [vmem:[#allocation8 + $0x8] sm:$0xff]
    %v404 = vld [vmem:[#allocation8 + $0x10] sm:$0xff]
    %v405 = vld [vmem:[#allocation8 + $0x18] sm:$0xff]
    %v406 = vld [vmem:[#allocation10] sm:$0xff]
    %v407 = vld [vmem:[#allocation10 + $0x8] sm:$0xff]
    %vm408 = vcmask 130048
    %v410 = vsel %vm408, %v401, 0
    %412 = vmatprep.subr.mxu0 0.0
    %413 = vmatpush1.msra.mxu0 %v406
    %414 = vmatprep.subr.mxu0 0.0
    %415 = vmatpush1.msra.mxu0 %v407
    %416 = vmatprep.subr.mxu0 0.0
    %417 = vmatpush1.msra.mxu0 0.0
    %418 = vmatprep.subr.mxu0 0.0
    %419 = vmatpush1.msra.mxu0 0.0
    %420 = vmatprep.subr.mxu0 0.0
    %421 = vmatpush1.msra.mxu0 0.0
    %422 = vmatprep.subr.mxu0 0.0
    %423 = vmatpush1.msra.mxu0 0.0
    %424 = vmatprep.subr.mxu0 0.0
    %425 = vmatpush1.msra.mxu0 0.0
    %426 = vmatprep.subr.mxu0 0.0
    %427 = vmatpush1.msra.mxu0 0.0
    %428 = vmatprep.subr.mxu0 0.0
    %429 = vmatpush1.msra.mxu0 0.0
    %430 = vmatprep.subr.mxu0 0.0
    %431 = vmatpush1.msra.mxu0 0.0
    %432 = vmatprep.subr.mxu0 0.0
    %433 = vmatpush1.msra.mxu0 0.0
    %434 = vmatprep.subr.mxu0 0.0
    %435 = vmatpush1.msra.mxu0 0.0
    %436 = vmatprep.subr.mxu0 0.0
    %437 = vmatpush1.msra.mxu0 0.0
    %438 = vmatprep.subr.mxu0 0.0
    %439 = vmatpush1.msra.mxu0 0.0
    %440 = vmatprep.subr.mxu0 0.0
    %441 = vmatpush1.msra.mxu0 0.0
    %442 = vmatprep.subr.mxu0 0.0
    %443 = vmatpush1.msra.mxu0 0.0
    %444 = vmatprep.subr.mxu0 0.0
    %445 = vmatpush1.msra.mxu0 0.0
    %446 = vmatprep.subr.mxu0 0.0
    %447 = vmatpush1.msra.mxu0 0.0
    %448 = vmatprep.subr.mxu0 0.0
    %449 = vmatpush1.msra.mxu0 0.0
    %450 = vmatprep.subr.mxu0 0.0
    %451 = vmatpush1.msra.mxu0 0.0
    %452 = vmatprep.subr.mxu0 0.0
    %453 = vmatpush1.msra.mxu0 0.0
    %454 = vmatprep.subr.mxu0 0.0
    %455 = vmatpush1.msra.mxu0 0.0
    %456 = vmatprep.subr.mxu0 0.0
    %457 = vmatpush1.msra.mxu0 0.0
    %458 = vmatprep.subr.mxu0 0.0
    %459 = vmatpush1.msra.mxu0 0.0
    %460 = vmatprep.subr.mxu0 0.0
    %461 = vmatpush1.msra.mxu0 0.0
    %462 = vmatprep.subr.mxu0 0.0
    %463 = vmatpush1.msra.mxu0 0.0
    %464 = vmatprep.subr.mxu0 0.0
    %465 = vmatpush1.msra.mxu0 0.0
    %466 = vmatprep.subr.mxu0 0.0
    %467 = vmatpush1.msra.mxu0 0.0
    %468 = vmatprep.subr.mxu0 0.0
    %469 = vmatpush1.msra.mxu0 0.0
    %470 = vmatprep.subr.mxu0 0.0
    %471 = vmatpush1.msra.mxu0 0.0
    %472 = vmatprep.subr.mxu0 0.0
    %473 = vmatpush1.msra.mxu0 0.0
    %474 = vmatprep.subr.mxu0 0.0
    %475 = vmatpush1.msra.mxu0 0.0
    %476 = vmatprep.mubr.f32.mxu0 0.0
    %477 = vmatmul.mubr.f32.gmra.mrb[0].mxu0 %v410
    %v478 = vpop.f32.mrb[0].mxu0
    %v479 = vadd.f32 0.0, %v478
    %v480 = vpop.f32.mrb[0].mxu0
    %481 = vdwg.mxu0
    %482 = vmatprep.subr.mxu0 0.0
    %483 = vmatpush1.msra.mxu0 %v402
    %484 = vmatprep.subr.mxu0 0.0
    %485 = vmatpush1.msra.mxu0 %v403
    %486 = vmatprep.subr.mxu0 0.0
    %487 = vmatpush1.msra.mxu0 %v404
    %488 = vmatprep.subr.mxu0 0.0
    %489 = vmatpush1.msra.mxu0 %v405
    %490 = vmatprep.subr.mxu0 0.0
    %491 = vmatpush1.msra.mxu0 0.0
    %492 = vmatprep.subr.mxu0 0.0
    %493 = vmatpush1.msra.mxu0 0.0
    %494 = vmatprep.subr.mxu0 0.0
    %495 = vmatpush1.msra.mxu0 0.0
    %496 = vmatprep.subr.mxu0 0.0
    %497 = vmatpush1.msra.mxu0 0.0
    %498 = vmatprep.subr.mxu0 0.0
    %499 = vmatpush1.msra.mxu0 0.0
    %500 = vmatprep.subr.mxu0 0.0
    %501 = vmatpush1.msra.mxu0 0.0
    %502 = vmatprep.subr.mxu0 0.0
    %503 = vmatpush1.msra.mxu0 0.0
    %504 = vmatprep.subr.mxu0 0.0
    %505 = vmatpush1.msra.mxu0 0.0
    %506 = vmatprep.subr.mxu0 0.0
    %507 = vmatpush1.msra.mxu0 0.0
    %508 = vmatprep.subr.mxu0 0.0
    %509 = vmatpush1.msra.mxu0 0.0
    %510 = vmatprep.subr.mxu0 0.0
    %511 = vmatpush1.msra.mxu0 0.0
    %512 = vmatprep.subr.mxu0 0.0
    %513 = vmatpush1.msra.mxu0 0.0
    %514 = vmatprep.subr.mxu0 0.0
    %515 = vmatpush1.msra.mxu0 0.0
    %516 = vmatprep.subr.mxu0 0.0
    %517 = vmatpush1.msra.mxu0 0.0
    %518 = vmatprep.subr.mxu0 0.0
    %519 = vmatpush1.msra.mxu0 0.0
    %520 = vmatprep.subr.mxu0 0.0
    %521 = vmatpush1.msra.mxu0 0.0
    %522 = vmatprep.subr.mxu0 0.0
    %523 = vmatpush1.msra.mxu0 0.0
    %524 = vmatprep.subr.mxu0 0.0
    %525 = vmatpush1.msra.mxu0 0.0
    %526 = vmatprep.subr.mxu0 0.0
    %527 = vmatpush1.msra.mxu0 0.0
    %528 = vmatprep.subr.mxu0 0.0
    %529 = vmatpush1.msra.mxu0 0.0
    %530 = vmatprep.subr.mxu0 0.0
    %531 = vmatpush1.msra.mxu0 0.0
    %532 = vmatprep.subr.mxu0 0.0
    %533 = vmatpush1.msra.mxu0 0.0
    %534 = vmatprep.subr.mxu0 0.0
    %535 = vmatpush1.msra.mxu0 0.0
    %536 = vmatprep.subr.mxu0 0.0
    %537 = vmatpush1.msra.mxu0 0.0
    %538 = vmatprep.subr.mxu0 0.0
    %539 = vmatpush1.msra.mxu0 0.0
    %540 = vmatprep.subr.mxu0 0.0
    %541 = vmatpush1.msra.mxu0 0.0
    %542 = vmatprep.subr.mxu0 0.0
    %543 = vmatpush1.msra.mxu0 0.0
    %544 = vmatprep.subr.mxu0 0.0
    %545 = vmatpush1.msra.mxu0 0.0
    %546 = vmatprep.mubr.f32.mxu0 0.0
    %547 = vmatmul.mubr.f32.gmra.mrb[0].mxu0 %v319
    %v548 = vpop.f32.mrb[0].mxu0
    %v549 = vadd.f32 %v479, %v548
    %v550 = vpop.f32.mrb[0].mxu0
    %551 = vdwg.mxu0
    %v552 = vld [vmem:[%s11] sm:$0x1]
    %v554 = vlaneseq
    %v555 = vshrl.u32 %v554, 7
    %v556 = vsub.s32 0, %v555
    %v557 = vrot.slane %v552, %v556
    %v559 = vadd.f32 %v549, %v557
    %560 = vst.msk [vmem:[#allocation11] sm:$0x3] %vm249, %v559
    // Predicated region
    $region70: #{tpu_custom_call.1} parent=1 // pred_check
      _
    $region71: #{tpu_custom_call.1} parent=1 // pred_check_branch
      %562 = sbr.rel (0) target = $region73
    $region72: #{tpu_custom_call.1} parent=1 // pred_region
      %s564 = ssub.s32 32, 32
      %565 = vsyncadd [#allocation4], %s564
      %s567 = sshll.u32 [#allocation11], 4
      %s568 = int_to_ptr.vmem [resolvable:$true] %s567
      %570 = dma.vmem_to_hbm [thread:$0]  %s568, 32, %s12, [#allocation4]
    $region73: #{tpu_custom_call.1} parent=1 // pred_fallthru
      _
    // Predicated region
    $region74: #{tpu_custom_call.1} parent=1 // pred_check
      _
    $region75: #{tpu_custom_call.1} parent=1 // pred_check_branch
      %572 = sbr.rel (0) target = $region77
    $region76: #{tpu_custom_call.1} parent=1 // pred_region
      %s574 = ssub.s32 32, 32
      %575 = vsyncadd [#allocation13], %s574
      %s577 = sshll.u32 [#allocation12], 4
      %s578 = int_to_ptr.vmem [resolvable:$true] %s577
      %580 = dma.vmem_to_hbm [thread:$0]  %s578, 32, %s13, [#allocation13]
    $region77: #{tpu_custom_call.1} parent=1 // pred_fallthru
      _
    // Predicated region
    $region78: #{tpu_custom_call.1} parent=1 // pred_check
      _
    $region79: #{tpu_custom_call.1} parent=1 // pred_check_branch
      %582 = sbr.rel (0) target = $region81
    $region80: #{tpu_custom_call.1} parent=1 // pred_region
      %583 = dma.done [#allocation4], 32
    $region81: #{tpu_custom_call.1} parent=1 // pred_fallthru
      _
    // Predicated region
    $region82: #{tpu_custom_call.1} parent=1 // pred_check
      _
    $region83: #{tpu_custom_call.1} parent=1 // pred_check_branch
      %585 = sbr.rel (0) target = $region85
    $region84: #{tpu_custom_call.1} parent=1 // pred_region
      %586 = dma.done [#allocation13], 32
    $region85: #{tpu_custom_call.1} parent=1 // pred_fallthru
      _
    %587 = vsyncpa [#allocation3], 1
    %588 = vsyncpa [#allocation6], 1
    %589 = vsyncpa [#allocation9], 1
    %590 = vsyncpa [#allocation4], 1
    %591 = vsyncpa [#allocation13], 1

</llo_original>
